<compile_context>
chip_gen: v6e
topology: v6e:2x2x1
jax: 0.10.0
libtpu: 0.0.40
codegen_flags: <defaults>
</compile_context>

<pallas_src>
import functools

import jax
import jax.numpy as jnp
from jax import lax
from jax.experimental import pallas as pl
from jax.experimental.pallas import tpu as pltpu

LANE = 128
_VMEM_LIMIT = 48 * 1024 * 1024   # > default scoped limit, < v7x physical 64 MiB


def _round_up(n, m):
    return ((n + m - 1) // m) * m


def _pad_to(a, shape):
    return jnp.pad(a, [(0, s - d) for d, s in zip(a.shape, shape)])


def _nbytes(*arrays):
    return int(sum(a.size * a.dtype.itemsize for a in arrays))


def _swish(v):
    return v * jax.nn.sigmoid(v)


# ---------------------------------------------------------------------------
# Kernel 1: fused input projections  [x | rbf] @ W1 -> [x_ji | x_kj | g]
# ---------------------------------------------------------------------------
def _edge_proj_kernel(xin_ref, w_ref, b_ref, xji_ref, xkj_ref, *, hp, use_swish):
    act = _swish if use_swish else (lambda v: v)
    y = jnp.dot(xin_ref[...], w_ref[...], preferred_element_type=jnp.float32)
    y = y + b_ref[...]
    xji_ref[...] = act(y[:, :hp])
    g = y[:, 2 * hp:]                                   # dense_rbf (no bias/act)
    xkj_ref[...] = (act(y[:, hp:2 * hp]) * g).astype(xkj_ref.dtype)


# ---------------------------------------------------------------------------
# Kernel 2: sbf projection + index-driven gather + fused bilinear + scatter_add
# ---------------------------------------------------------------------------
def _triplet_kernel(idx_ref, xkj_ref, sbf_ref, wsbf_ref, wbil_ref,
                    agg_ref, gbuf, mbuf, *, t_tile, nb, cdt):
    t = pl.program_id(0)

    @pl.when(t == 0)
    def _():
        agg_ref[...] = jnp.zeros_like(agg_ref)

    base = t * t_tile

    # gather x_kj[id_expand_kj] row-by-row; indices come from SMEM (prefetch).
    def gather_row(r, carry):
        e = idx_ref[0, base + r]
        gbuf[pl.ds(r, 1), :] = xkj_ref[pl.ds(e, 1), :]
        return carry
    lax.fori_loop(0, t_tile, gather_row, 0)

    xg = gbuf[...]                                           # [t_tile, Hp] f32
    sbf_o = jnp.dot(sbf_ref[...], wsbf_ref[...],
                    preferred_element_type=jnp.float32)      # [t_tile, NB]

    # einsum('wj,wl,ijl->wi') as ONE matmul:
    #   z[w, j*Hp + l] = sbf_o[w, j] * xg[w, l];   Wr[j*Hp + l, i] = W[i, j, l]
    z = jnp.concatenate([sbf_o[:, j:j + 1] * xg for j in range(nb)], axis=1)
    m = jnp.dot(z.astype(cdt), wbil_ref[...],
                preferred_element_type=jnp.float32)          # [t_tile, Hp]
    mbuf[...] = m

    # scatter_add over id_reduce_ji into the VMEM-resident accumulator output.
    def scatter_row(r, carry):
        e = idx_ref[1, base + r]
        agg_ref[pl.ds(e, 1), :] = agg_ref[pl.ds(e, 1), :] + mbuf[pl.ds(r, 1), :]
        return carry
    lax.fori_loop(0, t_tile, scatter_row, 0)


# ---------------------------------------------------------------------------
# Kernel 3: residual stacks + skip connection (VMEM scratch accumulator)
# ---------------------------------------------------------------------------
def _residual_kernel(x_ref, xji_ref, agg_ref,
                     wb1, bb1, wb2, bb2, wf, bfin, wa1, ba1, wa2, ba2,
                     out_ref, acc, *, n_before, n_after, use_swish, cdt):
    act = _swish if use_swish else (lambda v: v)

    def dense(v, w, b):
        y = jnp.dot(v.astype(cdt), w, preferred_element_type=jnp.float32) + b
        return act(y)

    acc[...] = xji_ref[...] + agg_ref[...]
    for i in range(n_before):
        h = dense(acc[...], wb1[i], bb1[i])
        h = dense(h, wb2[i], bb2[i])
        acc[...] = acc[...] + h
    acc[...] = dense(acc[...], wf[...], bfin[...])          # final_before_skip
    acc[...] = x_ref[...] + acc[...]                        # skip connection
    for i in range(n_after):
        h = dense(acc[...], wa1[i], ba1[i])
        h = dense(h, wa2[i], ba2[i])
        acc[...] = acc[...] + h
    out_ref[...] = acc[...]


# ---------------------------------------------------------------------------
# Wrapper
# ---------------------------------------------------------------------------
def interaction_block_forward(x, rbf, sbf, id_expand_kj, id_reduce_ji, params,
                              *, use_swish=True, compute_dtype=jnp.bfloat16,
                              edge_tile=256, triplet_tile=256):
    E, H = x.shape
    T, S = sbf.shape
    R = rbf.shape[1]
    NB = params["W_bilin"].shape[1]
    n_before = int(params["wb1"].shape[0])
    n_after = int(params["wa1"].shape[0])
    cdt = compute_dtype
    f32 = jnp.float32

    Hp = _round_up(H, LANE)                                  # lane-dense features
    e_tile = _round_up(min(edge_tile, _round_up(E, 8)), 8)
    t_tile = _round_up(min(triplet_tile, _round_up(T, 8)), 8)
    E_pad = _round_up(E, e_tile)
    T_pad = _round_up(T, t_tile)

    # ---- padded inputs ------------------------------------------------------
    x_p = _pad_to(x.astype(f32), (E_pad, Hp))
    rbf_p = _pad_to(rbf.astype(f32), (E_pad, R))
    sbf_p = _pad_to(sbf.astype(f32), (T_pad, S))             # padded rows -> 0
    idx = jnp.zeros((2, T_pad), jnp.int32)
    idx = idx.at[0, :T].set(id_expand_kj.astype(jnp.int32))
    idx = idx.at[1, :T].set(id_reduce_ji.astype(jnp.int32))

    # ---- padded / fused weights ---------------------------------------------
    def pad_w(w):
        return _pad_to(w.astype(f32), (Hp, Hp))

    W1 = jnp.zeros((Hp + R, 3 * Hp), f32)
    W1 = W1.at[:Hp, :Hp].set(pad_w(params["w_ji"]))
    W1 = W1.at[:Hp, Hp:2 * Hp].set(pad_w(params["w_kj"]))
    W1 = W1.at[Hp:, 2 * Hp:].set(_pad_to(params["w_rbf"].astype(f32), (R, Hp)))
    W1 = W1.astype(cdt)
    b1 = jnp.concatenate([_pad_to(params["b_ji"].astype(f32), (1, Hp)),
                          _pad_to(params["b_kj"].astype(f32), (1, Hp)),
                          jnp.zeros((1, Hp), f32)], axis=1)

    Wp = _pad_to(params["W_bilin"].astype(f32), (Hp, NB, Hp))
    Wr = jnp.transpose(Wp, (1, 2, 0)).reshape(NB * Hp, Hp).astype(cdt)
    w_sbf = params["w_sbf"].astype(f32)

    def pad_stack_w(w):
        if w.shape[0] == 0:
            return jnp.zeros((1, Hp, Hp), cdt)
        return _pad_to(w.astype(f32), (w.shape[0], Hp, Hp)).astype(cdt)

    def pad_stack_b(b):
        if b.shape[0] == 0:
            return jnp.zeros((1, 1, Hp), f32)
        return _pad_to(b.astype(f32), (b.shape[0], 1, Hp))

    wb1 = pad_stack_w(params["wb1"]); bb1 = pad_stack_b(params["bb1"])
    wb2 = pad_stack_w(params["wb2"]); bb2 = pad_stack_b(params["bb2"])
    wa1 = pad_stack_w(params["wa1"]); ba1 = pad_stack_b(params["ba1"])
    wa2 = pad_stack_w(params["wa2"]); ba2 = pad_stack_b(params["ba2"])
    wf = pad_w(params["wf"]).astype(cdt)
    bfin = _pad_to(params["bf"].astype(f32), (1, Hp))

    n_e = E_pad // e_tile
    n_t = T_pad // t_tile

    # ---- kernel 1: fused edge projections ------------------------------------
    xin = jnp.concatenate([x_p, rbf_p], axis=1).astype(cdt)   # [E_pad, Hp+R]
    x_ji, x_kj = pl.pallas_call(
        functools.partial(_edge_proj_kernel, hp=Hp, use_swish=use_swish),
        grid=(n_e,),
        in_specs=[pl.BlockSpec((e_tile, Hp + R), lambda i: (i, 0)),
                  pl.BlockSpec((Hp + R, 3 * Hp), lambda i: (0, 0)),
                  pl.BlockSpec((1, 3 * Hp), lambda i: (0, 0))],
        out_specs=[pl.BlockSpec((e_tile, Hp), lambda i: (i, 0)),
                   pl.BlockSpec((e_tile, Hp), lambda i: (i, 0))],
        out_shape=[jax.ShapeDtypeStruct((E_pad, Hp), f32),
                   jax.ShapeDtypeStruct((E_pad, Hp), f32)],
        compiler_params=pltpu.CompilerParams(
            dimension_semantics=("parallel",), vmem_limit_bytes=_VMEM_LIMIT),
        cost_estimate=pl.CostEstimate(
            flops=int(2 * E_pad * (Hp + R) * 3 * Hp),
            transcendentals=int(2 * E_pad * Hp),
            bytes_accessed=_nbytes(xin, W1, b1) + 8 * E_pad * Hp),
    )(xin, W1, b1)

    # ---- kernel 2: gather + fused bilinear + scatter_add ---------------------
    # TODO(synk): for very large E the resident [E_pad, Hp] x_kj / agg buffers
    # should themselves be tiled over a second (edge) grid axis.
    grid_spec = pltpu.PrefetchScalarGridSpec(
        num_scalar_prefetch=1,
        grid=(n_t,),
        in_specs=[pl.BlockSpec((E_pad, Hp), lambda t, idx_ref: (0, 0)),
                  pl.BlockSpec((t_tile, S), lambda t, idx_ref: (t, 0)),
                  pl.BlockSpec((S, NB), lambda t, idx_ref: (0, 0)),
                  pl.BlockSpec((NB * Hp, Hp), lambda t, idx_ref: (0, 0))],
        out_specs=pl.BlockSpec((E_pad, Hp), lambda t, idx_ref: (0, 0)),
        scratch_shapes=[pltpu.VMEM((t_tile, Hp), f32),
                        pltpu.VMEM((t_tile, Hp), f32)])
    agg = pl.pallas_call(
        functools.partial(_triplet_kernel, t_tile=t_tile, nb=NB, cdt=cdt),
        grid_spec=grid_spec,
        out_shape=jax.ShapeDtypeStruct((E_pad, Hp), f32),
        compiler_params=pltpu.CompilerParams(
            dimension_semantics=("arbitrary",), vmem_limit_bytes=_VMEM_LIMIT),
        cost_estimate=pl.CostEstimate(
            flops=int(2 * T_pad * (S * NB + NB * Hp * Hp)),
            transcendentals=0,
            bytes_accessed=_nbytes(x_kj, sbf_p, w_sbf, Wr) + 4 * E_pad * Hp),
    )(idx, x_kj, sbf_p, w_sbf, Wr)

    # ---- kernel 3: residual stacks + skip ------------------------------------
    edge_spec = pl.BlockSpec((e_tile, Hp), lambda i: (i, 0))
    full3 = lambda a: pl.BlockSpec(a.shape, lambda i: (0, 0, 0))
    out = pl.pallas_call(
        functools.partial(_residual_kernel, n_before=n_before, n_after=n_after,
                          use_swish=use_swish, cdt=cdt),
        grid=(n_e,),
        in_specs=[edge_spec, edge_spec, edge_spec,
                  full3(wb1), full3(bb1), full3(wb2), full3(bb2),
                  pl.BlockSpec((Hp, Hp), lambda i: (0, 0)),
                  pl.BlockSpec((1, Hp), lambda i: (0, 0)),
                  full3(wa1), full3(ba1), full3(wa2), full3(ba2)],
        out_specs=edge_spec,
        out_shape=jax.ShapeDtypeStruct((E_pad, Hp), f32),
        scratch_shapes=[pltpu.VMEM((e_tile, Hp), f32)],
        compiler_params=pltpu.CompilerParams(
            dimension_semantics=("parallel",), vmem_limit_bytes=_VMEM_LIMIT),
        cost_estimate=pl.CostEstimate(
            flops=int(2 * E_pad * Hp * Hp * (2 * (n_before + n_after) + 1)),
            transcendentals=int(E_pad * Hp * (2 * (n_before + n_after) + 1)),
            bytes_accessed=_nbytes(x_p, x_ji, agg, wb1, wb2, wa1, wa2, wf)
            + 4 * E_pad * Hp),
    )(x_p, x_ji, agg, wb1, bb1, wb2, bb2, wf, bfin, wa1, ba1, wa2, ba2)

    return out[:E, :H]


# ---------------------------------------------------------------------------
# Parameter init + pure-JAX reference (mirrors the PyTorch forward)
# ---------------------------------------------------------------------------
def init_params(key, emb_size, num_radial, num_spherical, num_bilinear,
                num_before_skip, num_after_skip):
    ks = list(jax.random.split(key, 20))

    def w(k, din, dout):
        return jax.random.normal(k, (din, dout), jnp.float32) / jnp.sqrt(din)

    def b(k, dout):
        return 0.01 * jax.random.normal(k, (1, dout), jnp.float32)

    def stacked_w(k, n, din, dout):
        return jax.random.normal(k, (n, din, dout), jnp.float32) / jnp.sqrt(din)

    def stacked_b(k, n, dout):
        return 0.01 * jax.random.normal(k, (n, 1, dout), jnp.float32)

    H = emb_size
    return dict(
        w_rbf=w(ks[0], num_radial, H),
        w_sbf=w(ks[1], num_radial * num_spherical, num_bilinear),
        w_ji=w(ks[2], H, H), b_ji=b(ks[3], H),
        w_kj=w(ks[4], H, H), b_kj=b(ks[5], H),
        W_bilin=jax.random.normal(ks[6], (H, num_bilinear, H), jnp.float32) * (2.0 / H),
        wb1=stacked_w(ks[7], num_before_skip, H, H), bb1=stacked_b(ks[8], num_before_skip, H),
        wb2=stacked_w(ks[9], num_before_skip, H, H), bb2=stacked_b(ks[10], num_before_skip, H),
        wf=w(ks[11], H, H), bf=b(ks[12], H),
        wa1=stacked_w(ks[13], num_after_skip, H, H), ba1=stacked_b(ks[14], num_after_skip, H),
        wa2=stacked_w(ks[15], num_after_skip, H, H), ba2=stacked_b(ks[16], num_after_skip, H),
    )


def reference_forward(x, rbf, sbf, id_expand_kj, id_reduce_ji, params,
                      *, use_swish=True):
    act = _swish if use_swish else (lambda v: v)

    def dense(v, w, bias=None, activate=True):
        y = v @ w
        if bias is not None:
            y = y + bias
        return act(y) if activate else y

    E = x.shape[0]
    x_ji = dense(x, params["w_ji"], params["b_ji"])
    x_kj = dense(x, params["w_kj"], params["b_kj"])
    g = rbf @ params["w_rbf"]
    x_kj = x_kj * g
    sbf_o = sbf @ params["w_sbf"]
    x_kj = x_kj[id_expand_kj]
    x_kj = jnp.einsum("wj,wl,ijl->wi", sbf_o, x_kj, params["W_bilin"])
    x_kj = jax.ops.segment_sum(x_kj, id_reduce_ji, num_segments=E)
    x2 = x_ji + x_kj
    for i in range(params["wb1"].shape[0]):
        h = dense(x2, params["wb1"][i], params["bb1"][i])
        h = dense(h, params["wb2"][i], params["bb2"][i])
        x2 = x2 + h
    x2 = dense(x2, params["wf"], params["bf"])
    xo = x + x2
    for i in range(params["wa1"].shape[0]):
        h = dense(xo, params["wa1"][i], params["ba1"][i])
        h = dense(h, params["wa2"][i], params["ba2"][i])
        xo = xo + h
    return xo


if __name__ == "__main__":
    emb_size = 32
    num_radial = 6
    num_spherical = 7
    num_bilinear = 8
    num_before_skip = 1
    num_after_skip = 2
    E = 16   # edges
    T = 24   # triplets

    key = jax.random.PRNGKey(0)
    k_par, k_x, k_rbf, k_sbf, k_ie, k_ir = jax.random.split(key, 6)

    params = init_params(k_par, emb_size, num_radial, num_spherical,
                         num_bilinear, num_before_skip, num_after_skip)

    x = jax.random.normal(k_x, (E, emb_size), jnp.float32)
    rbf = jax.random.normal(k_rbf, (E, num_radial), jnp.float32)
    sbf = jax.random.normal(k_sbf, (T, num_radial * num_spherical), jnp.float32)
    id_expand_kj = jax.random.randint(k_ie, (T,), 0, E, jnp.int32)
    id_reduce_ji = jax.random.randint(k_ir, (T,), 0, E, jnp.int32)

    # NOTE: module default activation=None (identity); swish (DimeNet standard)
    # is used here — flip use_swish=False for the identity case.
    ref = reference_forward(x, rbf, sbf, id_expand_kj, id_reduce_ji, params,
                            use_swish=True)
    scale = 1.0 + float(jnp.max(jnp.abs(ref)))

    # exact (f32) path — exercises multi-tile grids + row/feature padding
    out_f32 = interaction_block_forward(
        x, rbf, sbf, id_expand_kj, id_reduce_ji, params, use_swish=True,
        compute_dtype=jnp.float32, edge_tile=8, triplet_tile=16)
    out_f32 = jax.block_until_ready(out_f32)
    assert out_f32.shape == (E, emb_size)
    err = float(jnp.max(jnp.abs(out_f32 - ref)))
    assert err < 3e-3 * scale, err

    # default bf16-MXU path (f32 accumulation) — bf16-appropriate tolerance
    out_bf16 = interaction_block_forward(
        x, rbf, sbf, id_expand_kj, id_reduce_ji, params, use_swish=True,
        compute_dtype=jnp.bfloat16, edge_tile=8, triplet_tile=16)
    out_bf16 = jax.block_until_ready(out_bf16)
    err_bf = float(jnp.max(jnp.abs(out_bf16 - ref)))
    assert err_bf < 1e-1 * scale, err_bf

    print("KERNEL_OK")
</pallas_src>

<mosaic_0001>
module attributes {stable_mosaic.version = 11 : i64} {
  func.func @_edge_proj_kernel(%arg0: i32, %arg1: memref<8x134xf32, #tpu.memory_space<vmem>>, %arg2: memref<134x384xf32, #tpu.memory_space<vmem>>, %arg3: memref<1x384xf32, #tpu.memory_space<vmem>>, %arg4: memref<8x128xf32, #tpu.memory_space<vmem>>, %arg5: memref<8x128xf32, #tpu.memory_space<vmem>>) attributes {dimension_semantics = [#tpu.dimension_semantics<parallel>], iteration_bounds = array<i64: 2>, scalar_prefetch = 0 : i64, scratch_operands = 0 : i64, tpu.core_type = #tpu.core_type<tc>, window_params = [{transform_indices = @transform_0, window_bounds = array<i64: 8, 134>}, {pipeline_mode = #tpu.pipeline_mode<synchronous>, transform_indices = @transform_1, window_bounds = array<i64: 134, 384>}, {pipeline_mode = #tpu.pipeline_mode<synchronous>, transform_indices = @transform_2, window_bounds = array<i64: 1, 384>}, {transform_indices = @transform_3, window_bounds = array<i64: 8, 128>}, {transform_indices = @transform_4, window_bounds = array<i64: 8, 128>}]} {
    %c0 = arith.constant 0 : index
    %c0_0 = arith.constant 0 : index
    %0 = vector.load %arg1[%c0, %c0_0] : memref<8x134xf32, #tpu.memory_space<vmem>>, vector<8x134xf32>
    %c0_1 = arith.constant 0 : index
    %c0_2 = arith.constant 0 : index
    %1 = vector.load %arg2[%c0_1, %c0_2] : memref<134x384xf32, #tpu.memory_space<vmem>>, vector<134x384xf32>
    %cst = arith.constant dense<0.000000e+00> : vector<8x384xf32>
    %2 = tpu.matmul %0, %1, %cst {dimension_numbers = #tpu.dot_dimension_numbers<[1], [0], [0], [1], [0, 0, 1, 1], [], []>} : vector<8x134xf32>, vector<134x384xf32>, vector<8x384xf32> -> vector<8x384xf32>
    %c0_3 = arith.constant 0 : index
    %c0_4 = arith.constant 0 : index
    %3 = vector.load %arg3[%c0_3, %c0_4] : memref<1x384xf32, #tpu.memory_space<vmem>>, vector<1x384xf32>
    %4 = vector.broadcast %3 : vector<1x384xf32> to vector<8x384xf32>
    %5 = arith.addf %2, %4 : vector<8x384xf32>
    %6 = vector.extract_strided_slice %5 {offsets = [0, 0], sizes = [8, 128], strides = [1, 1]} : vector<8x384xf32> to vector<8x128xf32>
    %7 = arith.negf %6 : vector<8x128xf32>
    %8 = math.exp %7 : vector<8x128xf32>
    %cst_5 = arith.constant 1.000000e+00 : f32
    %9 = vector.broadcast %cst_5 : f32 to vector<8x128xf32>
    %10 = arith.addf %9, %8 : vector<8x128xf32>
    %11 = arith.divf %9, %10 : vector<8x128xf32>
    %12 = arith.mulf %6, %11 : vector<8x128xf32>
    %c0_6 = arith.constant 0 : index
    %c0_7 = arith.constant 0 : index
    %13 = vector.load %arg4[%c0_6, %c0_7] : memref<8x128xf32, #tpu.memory_space<vmem>>, vector<8x128xf32>
    tpu.vector_store %arg4[%c0_6, %c0_7], %12 {strides = array<i32>} : memref<8x128xf32, #tpu.memory_space<vmem>>, vector<8x128xf32>,
    %14 = vector.extract_strided_slice %5 {offsets = [0, 256], sizes = [8, 128], strides = [1, 1]} : vector<8x384xf32> to vector<8x128xf32>
    %15 = vector.extract_strided_slice %5 {offsets = [0, 128], sizes = [8, 128], strides = [1, 1]} : vector<8x384xf32> to vector<8x128xf32>
    %16 = arith.negf %15 : vector<8x128xf32>
    %17 = math.exp %16 : vector<8x128xf32>
    %cst_8 = arith.constant 1.000000e+00 : f32
    %18 = vector.broadcast %cst_8 : f32 to vector<8x128xf32>
    %19 = arith.addf %18, %17 : vector<8x128xf32>
    %20 = arith.divf %18, %19 : vector<8x128xf32>
    %21 = arith.mulf %15, %20 : vector<8x128xf32>
    %22 = arith.mulf %21, %14 : vector<8x128xf32>
    %c0_9 = arith.constant 0 : index
    %c0_10 = arith.constant 0 : index
    %23 = vector.load %arg5[%c0_9, %c0_10] : memref<8x128xf32, #tpu.memory_space<vmem>>, vector<8x128xf32>
    tpu.vector_store %arg5[%c0_9, %c0_10], %22 {strides = array<i32>} : memref<8x128xf32, #tpu.memory_space<vmem>>, vector<8x128xf32>,
    return
  }
  func.func @transform_0(%arg0: i32) -> (i32, i32) {
    %c0_i32 = arith.constant 0 : i32
    %c0_i32_0 = arith.constant 0 : i32
    return %arg0, %c0_i32 : i32, i32
  }
  func.func @transform_1(%arg0: i32) -> (i32, i32) {
    %c0_i32 = arith.constant 0 : i32
    %c0_i32_0 = arith.constant 0 : i32
    %c0_i32_1 = arith.constant 0 : i32
    return %c0_i32, %c0_i32_0 : i32, i32
  }
  func.func @transform_2(%arg0: i32) -> (i32, i32) {
    %c0_i32 = arith.constant 0 : i32
    %c0_i32_0 = arith.constant 0 : i32
    %c0_i32_1 = arith.constant 0 : i32
    return %c0_i32, %c0_i32_0 : i32, i32
  }
  func.func @transform_3(%arg0: i32) -> (i32, i32) {
    %c0_i32 = arith.constant 0 : i32
    %c0_i32_0 = arith.constant 0 : i32
    return %arg0, %c0_i32 : i32, i32
  }
  func.func @transform_4(%arg0: i32) -> (i32, i32) {
    %c0_i32 = arith.constant 0 : i32
    %c0_i32_0 = arith.constant 0 : i32
    return %arg0, %c0_i32 : i32, i32
  }
}

</mosaic_0001>

<llo_original>
// kernel: tpu_custom_call.1
$region0: #{tpu_custom_call.1}
  #allocation0 [shape = 'u32[]', space=smem, size = 0x4, offset = 0x4, fixed_abs, tag = 'smem constant byte address 0x4 - core index']
  #allocation1 [shape = 'u32[144,128]{1,0:T(1,128)}', space=vmem, size = 0x12000, scoped, tag = 'internal scratch']
  %s0 = inlined_call_operand.hbm [shape: f32[16,134], index: 0, kind: input, shape index: {}]
  %s1 = inlined_call_operand.hbm [shape: f32[134,384], index: 1, kind: input, shape index: {}]
  %s2 = inlined_call_operand.vmem [shape: f32[1,384], index: 2, kind: input, shape index: {}]
  %s3 = inlined_call_operand.hbm [shape: f32[16,128], index: 3, kind: output, shape index: {0}]
  %s4 = inlined_call_operand.hbm [shape: f32[16,128], index: 4, kind: output, shape index: {1}]
  %5 = xla_tuple %s3, %s4
  %s6 = sld [smem:[#allocation0]]
  $region61: #{tpu_custom_call.1} parent=0
    _
  %s8 = ssub.s32 1, %s6
  %s9 = scalar_select 0, %s8, %s6
  $region1: #{tpu_custom_call.1} parent=0
    #allocation2 [shape = 'u8[16384]{0}', space=vmem, size = 0x4000, scoped, tag = 'input window, operand 0']
    #allocation3 [shape = 's32[2]{0}', space=sflag, size = 0x8, scoped, tag = 'scoped memory for tpu_custom_call.1']
    #allocation4 [shape = 's32[2]{0}', space=sflag, size = 0x8, scoped, tag = 'scoped memory for tpu_custom_call.1']
    #allocation5 [shape = 'u8[208896]{0}', space=vmem, size = 0x33000, scoped, tag = 'input window, operand 1, single buffered']
    #allocation6 [shape = 's32[1]{0}', space=sflag, size = 0x4, scoped, tag = 'scoped memory for tpu_custom_call.1']
    #allocation7 [shape = 'u8[8192]{0}', space=vmem, size = 0x2000, scoped, tag = 'output window, operand 0']
    #allocation8 [shape = 'u8[8192]{0}', space=vmem, size = 0x2000, scoped, tag = 'output window, operand 1']
    #allocation9 [shape = 's32[2]{0}', space=sflag, size = 0x8, scoped, tag = 'scoped memory for tpu_custom_call.1']
    %10 = vsyncpa [#allocation3], 0
    %s11 = scalar_lea.sflag [#allocation3], 1
    %12 = vsyncpa %s11, 0
    %13 = vsyncpa [#allocation6], 0
    %14 = vsyncpa [#allocation4], 0
    %s15 = scalar_lea.sflag [#allocation4], 1
    %16 = vsyncpa %s15, 0
    %17 = vsyncpa [#allocation9], 0
    %s18 = scalar_lea.sflag [#allocation9], 1
    %19 = vsyncpa %s18, 0
    loop: start=0, step=1, limit=4
    $region2: #{tpu_custom_call.1} parent=1 // loop_pre_header
      _
    $region3: #{tpu_custom_call.1} parent=1 // loop_header
      %s21 = sphi 0, %s25
      %p22 = scmp.ge.s32.totalorder %s21, 4
      %s31 = sphi 0, %s33
      %s34 = sphi 0, %s31
      %s35 = sphi 0, %s34
      %s51 = sphi 0, %s35
      %s55 = sphi 0, %s55
      %s57 = sphi 0, %s55
      %s58 = sphi 0, %s57
      %s72 = sphi 0, %s58
      %s76 = sphi 0, %s76
      %s78 = sphi 0, %s76
      %s79 = sphi 0, %s78
      %s93 = sphi 0, %s79
      %s99 = sphi 0, %s101
      %s102 = sphi 0, %s99
      %s103 = sphi 0, %s102
      %s119 = sphi 0, %s103
      %s125 = sphi 0, %s127
      %s128 = sphi 0, %s125
      %s129 = sphi 0, %s128
      %s145 = sphi 0, %s129
    $region4: #{tpu_custom_call.1} parent=1 // loop_header_branch
      %24 = sbr.rel (%p22) target = $region8
    $region5: #{tpu_custom_call.1} parent=1 // loop_body
      %s26 = ssub.s32 %s21, 1
      %s27 = ssub.s32 %s21, 2
      %s28 = sadd.s32 %s21, 1
      %s29 = ssub.s32 %s21, %s28
      %p30 = scmp.eq.s32.totalorder %s29, 0
      %s32 = sadd.s32 %s31, 1
      %s33 = scalar_select %p30, %s31, %s32
      %p36 = pneg %p30
      %p37 = scmp.eq.s32.totalorder %s21, 1
      %p38 = por %p36, %p37
      %p39 = scmp.ne.s32.totalorder %s31, %s34
      %p40 = scmp.eq.s32.totalorder %s21, 0
      %p41 = por %p39, %p40
      %p42 = scmp.ne.s32.totalorder %s31, %s34
      %p43 = scmp.eq.s32.totalorder %s26, 1
      %p44 = por %p42, %p43
      %p45 = scmp.ne.s32.totalorder %s34, %s35
      %p46 = scmp.eq.s32.totalorder %s26, 0
      %p47 = por %p45, %p46
      %p48 = scmp.ne.s32.totalorder %s34, %s35
      %p49 = scmp.eq.s32.totalorder %s27, 1
      %p50 = por %p48, %p49
      %p52 = scmp.ne.s32.totalorder %s35, %s51
      %p53 = scmp.eq.s32.totalorder %s27, 0
      %p54 = por %p52, %p53
      %s56 = sadd.s32 %s55, 1
      %p59 = scmp.eq.s32.totalorder %s21, 1
      %p60 = scmp.ne.s32.totalorder %s55, %s57
      %p61 = scmp.eq.s32.totalorder %s21, 0
      %p62 = por %p60, %p61
      %p63 = scmp.ne.s32.totalorder %s55, %s57
      %p64 = scmp.eq.s32.totalorder %s26, 1
      %p65 = por %p63, %p64
      %p66 = scmp.ne.s32.totalorder %s57, %s58
      %p67 = scmp.eq.s32.totalorder %s26, 0
      %p68 = por %p66, %p67
      %p69 = scmp.ne.s32.totalorder %s57, %s58
      %p70 = scmp.eq.s32.totalorder %s27, 1
      %p71 = por %p69, %p70
      %p73 = scmp.ne.s32.totalorder %s58, %s72
      %p74 = scmp.eq.s32.totalorder %s27, 0
      %p75 = por %p73, %p74
      %s77 = sadd.s32 %s76, 1
      %p80 = scmp.eq.s32.totalorder %s21, 1
      %p81 = scmp.ne.s32.totalorder %s76, %s78
      %p82 = scmp.eq.s32.totalorder %s21, 0
      %p83 = por %p81, %p82
      %p84 = scmp.ne.s32.totalorder %s76, %s78
      %p85 = scmp.eq.s32.totalorder %s26, 1
      %p86 = por %p84, %p85
      %p87 = scmp.ne.s32.totalorder %s78, %s79
      %p88 = scmp.eq.s32.totalorder %s26, 0
      %p89 = por %p87, %p88
      %p90 = scmp.ne.s32.totalorder %s78, %s79
      %p91 = scmp.eq.s32.totalorder %s27, 1
      %p92 = por %p90, %p91
      %p94 = scmp.ne.s32.totalorder %s79, %s93
      %p95 = scmp.eq.s32.totalorder %s27, 0
      %p96 = por %p94, %p95
      %s97 = ssub.s32 %s21, %s28
      %p98 = scmp.eq.s32.totalorder %s97, 0
      %s100 = sadd.s32 %s99, 1
      %s101 = scalar_select %p98, %s99, %s100
      %p104 = pneg %p98
      %p105 = scmp.eq.s32.totalorder %s21, 1
      %p106 = por %p104, %p105
      %p107 = scmp.ne.s32.totalorder %s99, %s102
      %p108 = scmp.eq.s32.totalorder %s21, 0
      %p109 = por %p107, %p108
      %p110 = scmp.ne.s32.totalorder %s99, %s102
      %p111 = scmp.eq.s32.totalorder %s26, 1
      %p112 = por %p110, %p111
      %p113 = scmp.ne.s32.totalorder %s102, %s103
      %p114 = scmp.eq.s32.totalorder %s26, 0
      %p115 = por %p113, %p114
      %p116 = scmp.ne.s32.totalorder %s102, %s103
      %p117 = scmp.eq.s32.totalorder %s27, 1
      %p118 = por %p116, %p117
      %p120 = scmp.ne.s32.totalorder %s103, %s119
      %p121 = scmp.eq.s32.totalorder %s27, 0
      %p122 = por %p120, %p121
      %s123 = ssub.s32 %s21, %s28
      %p124 = scmp.eq.s32.totalorder %s123, 0
      %s126 = sadd.s32 %s125, 1
      %s127 = scalar_select %p124, %s125, %s126
      %p130 = pneg %p124
      %p131 = scmp.eq.s32.totalorder %s21, 1
      %p132 = por %p130, %p131
      %p133 = scmp.ne.s32.totalorder %s125, %s128
      %p134 = scmp.eq.s32.totalorder %s21, 0
      %p135 = por %p133, %p134
      %p136 = scmp.ne.s32.totalorder %s125, %s128
      %p137 = scmp.eq.s32.totalorder %s26, 1
      %p138 = por %p136, %p137
      %p139 = scmp.ne.s32.totalorder %s128, %s129
      %p140 = scmp.eq.s32.totalorder %s26, 0
      %p141 = por %p139, %p140
      %p142 = scmp.ne.s32.totalorder %s128, %s129
      %p143 = scmp.eq.s32.totalorder %s27, 1
      %p144 = por %p142, %p143
      %p146 = scmp.ne.s32.totalorder %s129, %s145
      %p147 = scmp.eq.s32.totalorder %s27, 0
      %p148 = por %p146, %p147
      %p149 = scmp.le.s32.totalorder 1, %s21
      %p150 = scmp.lt.s32.totalorder %s21, 3
      %p151 = pnand %p149, %p150
      %p152 = pneg %p151
      // Predicated region
      $region9: #{tpu_custom_call.1} parent=5 // pred_check
        _
      $region10: #{tpu_custom_call.1} parent=5 // pred_check_branch
        %154 = sbr.rel (%p151) target = $region12
      $region11: #{tpu_custom_call.1} parent=5 // pred_region
        %s155 = ssub.s32 %s21, 1
        // Predicated region
        $region13: #{tpu_custom_call.1} parent=11 // pred_check
          %p156 = pneg %p68
        $region14: #{tpu_custom_call.1} parent=11 // pred_check_branch
          %158 = sbr.rel (%p156) target = $region16
        $region15: #{tpu_custom_call.1} parent=11 // pred_region
          %s160 = ssub.s32 6528, 6528
          %161 = vsyncadd [#allocation6], %s160
          %s162 = sshll.u32 [#allocation5], 4
          %s163 = int_to_ptr.vmem [resolvable:$true] %s162
          %168 = dma.hbm_to_vmem [thread:$0]  %s1, 6528, %s163, [#allocation6], 384, 384, 24
        $region16: #{tpu_custom_call.1} parent=11 // pred_fallthru
          _
        // Predicated region
        $region17: #{tpu_custom_call.1} parent=11 // pred_check
          %p169 = pneg %p89
        $region18: #{tpu_custom_call.1} parent=11 // pred_check_branch
          %171 = sbr.rel (%p169) target = $region20
        $region19: #{tpu_custom_call.1} parent=11 // pred_region
          _
        $region20: #{tpu_custom_call.1} parent=11 // pred_fallthru
          _
      $region12: #{tpu_custom_call.1} parent=5 // pred_fallthru
        _
      %p172 = scmp.lt.s32.totalorder %s21, 2
      // Predicated region
      $region21: #{tpu_custom_call.1} parent=5 // pred_check
        %p173 = pneg %p172
      $region22: #{tpu_custom_call.1} parent=5 // pred_check_branch
        %175 = sbr.rel (%p173) target = $region24
      $region23: #{tpu_custom_call.1} parent=5 // pred_region
        // Predicated region
        $region25: #{tpu_custom_call.1} parent=23 // pred_check
          %p176 = pneg %p41
        $region26: #{tpu_custom_call.1} parent=23 // pred_check_branch
          %178 = sbr.rel (%p176) target = $region28
        $region27: #{tpu_custom_call.1} parent=23 // pred_region
          %s179 = sand.u32 %s31, 1
          %s180 = scalar_lea.sflag [#allocation3], %s179
          %s181 = sand.u32 %s31, 1
          %s182 = smul.addr %s181, 16
          %s183 = scalar_lea.vmem [#allocation2], %s182
          %s185 = ssub.s32 256, 256
          %186 = vsyncadd %s180, %s185
          %s187 = smul.addr %s21, 2
          %s188 = smul.addr %s187, 128
          %s189 = scalar_lea.hbm %s0, %s188
          %s191 = sshll.u32 %s183, 4
          %s192 = int_to_ptr.vmem [resolvable:$true] %s191
          %194 = dma.hbm_to_vmem [thread:$0]  %s189, 256, %s192, %s180
        $region28: #{tpu_custom_call.1} parent=23 // pred_fallthru
          _
      $region24: #{tpu_custom_call.1} parent=5 // pred_fallthru
        _
      %p195 = scmp.le.s32.totalorder 1, %s21
      %p196 = scmp.lt.s32.totalorder %s21, 3
      %p197 = pnand %p195, %p196
      %p198 = pneg %p197
      // Predicated region
      $region29: #{tpu_custom_call.1} parent=5 // pred_check
        _
      $region30: #{tpu_custom_call.1} parent=5 // pred_check_branch
        %200 = sbr.rel (%p197) target = $region32
      $region31: #{tpu_custom_call.1} parent=5 // pred_region
        %s201 = ssub.s32 %s21, 1
        %s202 = sand.u32 %s34, 1
        %s203 = scalar_lea.sflag [#allocation3], %s202
        %s204 = sand.u32 %s34, 1
        %s205 = smul.addr %s204, 16
        %s206 = scalar_lea.vmem [#allocation2], %s205
        // Predicated region
        $region33: #{tpu_custom_call.1} parent=31 // pred_check
          %p207 = pneg %p47
        $region34: #{tpu_custom_call.1} parent=31 // pred_check_branch
          %209 = sbr.rel (%p207) target = $region36
        $region35: #{tpu_custom_call.1} parent=31 // pred_region
          %210 = dma.done %s203, 256
        $region36: #{tpu_custom_call.1} parent=31 // pred_fallthru
          _
        // Predicated region
        $region37: #{tpu_custom_call.1} parent=31 // pred_check
          %p211 = pneg %p68
        $region38: #{tpu_custom_call.1} parent=31 // pred_check_branch
          %213 = sbr.rel (%p211) target = $region40
        $region39: #{tpu_custom_call.1} parent=31 // pred_region
          %214 = dma.done [#allocation6], 6528
        $region40: #{tpu_custom_call.1} parent=31 // pred_fallthru
          _
        %s215 = sand.u32 %s34, 1
        %s216 = scalar_lea.sflag [#allocation3], %s215
        %s217 = sand.u32 %s34, 1
        %s218 = smul.addr %s217, 16
        %s219 = scalar_lea.vmem [#allocation2], %s218
        %p220 = pneg %p47
        %p221 = pneg %p44
        %p222 = pneg %p68
        %p223 = pneg %p65
        %p224 = pneg %p89
        %p225 = pneg %p86
        %p226 = pneg %p115
        %p227 = pneg %p112
        %s228 = sand.u32 %s102, 1
        %s229 = scalar_lea.sflag [#allocation4], %s228
        %s230 = sand.u32 %s102, 1
        %s231 = smul.addr %s230, 8
        %s232 = scalar_lea.vmem [#allocation7], %s231
        %p233 = pneg %p141
        %p234 = pneg %p138
        %s235 = sand.u32 %s128, 1
        %s236 = scalar_lea.sflag [#allocation9], %s235
        %s237 = sand.u32 %s128, 1
        %s238 = smul.addr %s237, 8
        %s239 = scalar_lea.vmem [#allocation8], %s238
        %v240 = vld [vmem:[%s206] sm:$0xff]
        %v241 = vld [vmem:[%s206 + $0x8] sm:$0xff]
        %v242 = vld [vmem:[#allocation5] sm:$0xff]
        %v243 = vld [vmem:[#allocation5 + $0x8] sm:$0xff]
        %v244 = vld [vmem:[#allocation5 + $0x10] sm:$0xff]
        %v245 = vld [vmem:[#allocation5 + $0x18] sm:$0xff]
        %v246 = vld [vmem:[#allocation5 + $0x20] sm:$0xff]
        %v247 = vld [vmem:[#allocation5 + $0x28] sm:$0xff]
        %v248 = vld [vmem:[#allocation5 + $0x30] sm:$0xff]
        %v249 = vld [vmem:[#allocation5 + $0x38] sm:$0xff]
        %v250 = vld [vmem:[#allocation5 + $0x40] sm:$0xff]
        %v251 = vld [vmem:[#allocation5 + $0x48] sm:$0xff]
        %v252 = vld [vmem:[#allocation5 + $0x50] sm:$0xff]
        %v253 = vld [vmem:[#allocation5 + $0x58] sm:$0xff]
        %v254 = vld [vmem:[#allocation5 + $0x60] sm:$0xff]
        %v255 = vld [vmem:[#allocation5 + $0x68] sm:$0xff]
        %v256 = vld [vmem:[#allocation5 + $0x70] sm:$0xff]
        %v257 = vld [vmem:[#allocation5 + $0x78] sm:$0xff]
        %v258 = vld [vmem:[#allocation5 + $0x80] sm:$0xff]
        %v259 = vld [vmem:[#allocation5 + $0x88] sm:$0xff]
        %v260 = vld [vmem:[#allocation5 + $0x90] sm:$0xff]
        %v261 = vld [vmem:[#allocation5 + $0x98] sm:$0xff]
        %v262 = vld [vmem:[#allocation5 + $0xa0] sm:$0xff]
        %v263 = vld [vmem:[#allocation5 + $0xa8] sm:$0xff]
        %v264 = vld [vmem:[#allocation5 + $0xb0] sm:$0xff]
        %v265 = vld [vmem:[#allocation5 + $0xb8] sm:$0xff]
        %v266 = vld [vmem:[#allocation5 + $0xc0] sm:$0xff]
        %v267 = vld [vmem:[#allocation5 + $0xc8] sm:$0xff]
        %v268 = vld [vmem:[#allocation5 + $0xd0] sm:$0xff]
        %v269 = vld [vmem:[#allocation5 + $0xd8] sm:$0xff]
        %v270 = vld [vmem:[#allocation5 + $0xe0] sm:$0xff]
        %v271 = vld [vmem:[#allocation5 + $0xe8] sm:$0xff]
        %v272 = vld [vmem:[#allocation5 + $0xf0] sm:$0xff]
        %v273 = vld [vmem:[#allocation5 + $0xf8] sm:$0xff]
        %v274 = vld [vmem:[#allocation5 + $0x100] sm:$0xff]
        %v275 = vld [vmem:[#allocation5 + $0x108] sm:$0xff]
        %v276 = vld [vmem:[#allocation5 + $0x110] sm:$0xff]
        %v277 = vld [vmem:[#allocation5 + $0x118] sm:$0xff]
        %v278 = vld [vmem:[#allocation5 + $0x120] sm:$0xff]
        %v279 = vld [vmem:[#allocation5 + $0x128] sm:$0xff]
        %v280 = vld [vmem:[#allocation5 + $0x130] sm:$0xff]
        %v281 = vld [vmem:[#allocation5 + $0x138] sm:$0xff]
        %v282 = vld [vmem:[#allocation5 + $0x140] sm:$0xff]
        %v283 = vld [vmem:[#allocation5 + $0x148] sm:$0xff]
        %v284 = vld [vmem:[#allocation5 + $0x150] sm:$0xff]
        %v285 = vld [vmem:[#allocation5 + $0x158] sm:$0xff]
        %v286 = vld [vmem:[#allocation5 + $0x160] sm:$0xff]
        %v287 = vld [vmem:[#allocation5 + $0x168] sm:$0xff]
        %v288 = vld [vmem:[#allocation5 + $0x170] sm:$0xff]
        %v289 = vld [vmem:[#allocation5 + $0x178] sm:$0xff]
        %v290 = vld [vmem:[#allocation5 + $0x180] sm:$0x3f]
        %v291 = vld [vmem:[#allocation5 + $0x188] sm:$0x3f]
        %v292 = vld [vmem:[#allocation5 + $0x190] sm:$0x3f]
        %v293 = vld [vmem:[%s2] sm:$0x7]
        %v295 = vlaneseq
        %v296 = vshrl.u32 %v295, 7
        %v297 = vsub.s32 0, %v296
        %v298 = vrot.slane %v293, %v297
        %v299 = vlaneseq
        %v300 = vshrl.u32 %v299, 7
        %v301 = vsub.s32 1, %v300
        %v302 = vrot.slane %v293, %v301
        %v303 = vlaneseq
        %v304 = vshrl.u32 %v303, 7
        %v305 = vsub.s32 2, %v304
        %v306 = vrot.slane %v293, %v305
        %vm310 = vcmask 48128
        %v312 = vsel %vm310, %v241, 0
        %vm314 = vcmask 1045504
        %v316 = vsel %vm314, %v290, 0
        %v319 = vsel %vm314, %v291, 0
        %v322 = vsel %vm314, %v292, 0
        %324 = vmatprep.subr.mxu0 %v288
        %325 = vmatpush1.msra.mxu0 %v287
        %326 = vmatprep.subr.mxu0 %v285
        %327 = vmatpush1.msra.mxu0 %v284
        %328 = vmatprep.subr.mxu0 %v282
        %329 = vmatpush1.msra.mxu0 %v281
        %330 = vmatprep.subr.mxu0 %v279
        %331 = vmatpush1.msra.mxu0 %v278
        %332 = vmatprep.subr.mxu0 %v276
        %333 = vmatpush1.msra.mxu0 %v275
        %334 = vmatprep.subr.mxu0 %v273
        %335 = vmatpush1.msra.mxu0 %v272
        %336 = vmatprep.subr.mxu0 %v270
        %337 = vmatpush1.msra.mxu0 %v269
        %338 = vmatprep.subr.mxu0 %v267
        %339 = vmatpush1.msra.mxu0 %v266
        %340 = vmatprep.subr.mxu0 %v264
        %341 = vmatpush1.msra.mxu0 %v263
        %342 = vmatprep.subr.mxu0 %v261
        %343 = vmatpush1.msra.mxu0 %v260
        %344 = vmatprep.subr.mxu0 %v258
        %345 = vmatpush1.msra.mxu0 %v257
        %346 = vmatprep.subr.mxu0 %v255
        %347 = vmatpush1.msra.mxu0 %v254
        %348 = vmatprep.subr.mxu0 %v252
        %349 = vmatpush1.msra.mxu0 %v251
        %350 = vmatprep.subr.mxu0 %v249
        %351 = vmatpush1.msra.mxu0 %v248
        %352 = vmatprep.subr.mxu0 %v246
        %353 = vmatpush1.msra.mxu0 %v245
        %354 = vmatprep.subr.mxu0 %v243
        %355 = vmatpush1.msra.mxu0 %v242
        %356 = vmatprep.subr.mxu0 0.0
        %357 = vmatpush2.msra.mxu0 0.0
        %358 = vmatprep.subr.mxu0 0.0
        %359 = vmatpush2.msra.mxu0 0.0
        %360 = vmatprep.subr.mxu0 0.0
        %361 = vmatpush2.msra.mxu0 0.0
        %362 = vmatprep.subr.mxu0 0.0
        %363 = vmatpush2.msra.mxu0 0.0
        %364 = vmatprep.subr.mxu0 0.0
        %365 = vmatpush2.msra.mxu0 0.0
        %366 = vmatprep.subr.mxu0 0.0
        %367 = vmatpush2.msra.mxu0 0.0
        %368 = vmatprep.subr.mxu0 0.0
        %369 = vmatpush2.msra.mxu0 0.0
        %370 = vmatprep.subr.mxu0 0.0
        %371 = vmatpush2.msra.mxu0 0.0
        %372 = vmatprep.subr.mxu0 0.0
        %373 = vmatpush2.msra.mxu0 0.0
        %374 = vmatprep.subr.mxu0 0.0
        %375 = vmatpush2.msra.mxu0 0.0
        %376 = vmatprep.subr.mxu0 0.0
        %377 = vmatpush2.msra.mxu0 0.0
        %378 = vmatprep.subr.mxu0 0.0
        %379 = vmatpush2.msra.mxu0 0.0
        %380 = vmatprep.subr.mxu0 0.0
        %381 = vmatpush2.msra.mxu0 0.0
        %382 = vmatprep.subr.mxu0 0.0
        %383 = vmatpush2.msra.mxu0 0.0
        %384 = vmatprep.subr.mxu0 0.0
        %385 = vmatpush2.msra.mxu0 0.0
        %386 = vmatprep.subr.mxu0 %v319
        %387 = vmatpush2.msra.mxu0 %v316
        %388 = vmatprep.mubr.f32.mxu0 %v312
        %389 = vmatmul.mubr.f32.gmra.mxu0 %v240
        %v390 = vpop.f32.mrf.mxu0
        %v391 = vadd.f32 %v298, %v390
        %v392 = vpop.f32.mrf.mxu0
        %v393 = vadd.f32 %v302, %v392
        %394 = vdwg.mxu0
        %395 = vmatprep.subr.mxu0 0.0
        %396 = vmatpush1.msra.mxu0 %v289
        %397 = vmatprep.subr.mxu0 0.0
        %398 = vmatpush1.msra.mxu0 %v286
        %399 = vmatprep.subr.mxu0 0.0
        %400 = vmatpush1.msra.mxu0 %v283
        %401 = vmatprep.subr.mxu0 0.0
        %402 = vmatpush1.msra.mxu0 %v280
        %403 = vmatprep.subr.mxu0 0.0
        %404 = vmatpush1.msra.mxu0 %v277
        %405 = vmatprep.subr.mxu0 0.0
        %406 = vmatpush1.msra.mxu0 %v274
        %407 = vmatprep.subr.mxu0 0.0
        %408 = vmatpush1.msra.mxu0 %v271
        %409 = vmatprep.subr.mxu0 0.0
        %410 = vmatpush1.msra.mxu0 %v268
        %411 = vmatprep.subr.mxu0 0.0
        %412 = vmatpush1.msra.mxu0 %v265
        %413 = vmatprep.subr.mxu0 0.0
        %414 = vmatpush1.msra.mxu0 %v262
        %415 = vmatprep.subr.mxu0 0.0
        %416 = vmatpush1.msra.mxu0 %v259
        %417 = vmatprep.subr.mxu0 0.0
        %418 = vmatpush1.msra.mxu0 %v256
        %419 = vmatprep.subr.mxu0 0.0
        %420 = vmatpush1.msra.mxu0 %v253
        %421 = vmatprep.subr.mxu0 0.0
        %422 = vmatpush1.msra.mxu0 %v250
        %423 = vmatprep.subr.mxu0 0.0
        %424 = vmatpush1.msra.mxu0 %v247
        %425 = vmatprep.subr.mxu0 0.0
        %426 = vmatpush1.msra.mxu0 %v244
        %427 = vmatprep.subr.mxu0 0.0
        %428 = vmatpush2.msra.mxu0 0.0
        %429 = vmatprep.subr.mxu0 0.0
        %430 = vmatpush2.msra.mxu0 0.0
        %431 = vmatprep.subr.mxu0 0.0
        %432 = vmatpush2.msra.mxu0 0.0
        %433 = vmatprep.subr.mxu0 0.0
        %434 = vmatpush2.msra.mxu0 0.0
        %435 = vmatprep.subr.mxu0 0.0
        %436 = vmatpush2.msra.mxu0 0.0
        %437 = vmatprep.subr.mxu0 0.0
        %438 = vmatpush2.msra.mxu0 0.0
        %439 = vmatprep.subr.mxu0 0.0
        %440 = vmatpush2.msra.mxu0 0.0
        %441 = vmatprep.subr.mxu0 0.0
        %442 = vmatpush2.msra.mxu0 0.0
        %443 = vmatprep.subr.mxu0 0.0
        %444 = vmatpush2.msra.mxu0 0.0
        %445 = vmatprep.subr.mxu0 0.0
        %446 = vmatpush2.msra.mxu0 0.0
        %447 = vmatprep.subr.mxu0 0.0
        %448 = vmatpush2.msra.mxu0 0.0
        %449 = vmatprep.subr.mxu0 0.0
        %450 = vmatpush2.msra.mxu0 0.0
        %451 = vmatprep.subr.mxu0 0.0
        %452 = vmatpush2.msra.mxu0 0.0
        %453 = vmatprep.subr.mxu0 0.0
        %454 = vmatpush2.msra.mxu0 0.0
        %455 = vmatprep.subr.mxu0 0.0
        %456 = vmatpush2.msra.mxu0 0.0
        %457 = vmatprep.subr.mxu0 0.0
        %458 = vmatpush2.msra.mxu0 %v322
        %459 = vmatprep.mubr.f32.mxu0 %v312
        %460 = vmatmul.mubr.f32.gmra.mxu0 %v240
        %v461 = vpop.f32.mrf.mxu0
        %v462 = vadd.f32 %v306, %v461
        %v463 = vpop.f32.mrf.mxu0
        %464 = vdwg.mxu0
        %v465 = vxor.u32 %v391, 2147483648
        %v466 = vmul.f32 %v465, 1.442695
        %v467 = vpow.pop %v466
        %v468 = vadd.f32 %v467, 1.0
        %v469 = vrcp.pop %v468
        %v470 = vmul.f32 1.0, %v469
        %v471 = vmul.f32 %v391, %v470
        %472 = vst [vmem:[%s232] sm:$0xff] %v471
        %v473 = vxor.u32 %v393, 2147483648
        %v474 = vmul.f32 %v473, 1.442695
        %v475 = vpow.pop %v474
        %v476 = vadd.f32 %v475, 1.0
        %v477 = vrcp.pop %v476
        %v478 = vmul.f32 1.0, %v477
        %v479 = vmul.f32 %v393, %v478
        %v480 = vmul.f32 %v479, %v462
        %481 = vst [vmem:[%s239] sm:$0xff] %v480
        %s482 = sand.u32 %s102, 1
        %s483 = scalar_lea.sflag [#allocation4], %s482
        %s484 = sand.u32 %s102, 1
        %s485 = smul.addr %s484, 8
        %s486 = scalar_lea.vmem [#allocation7], %s485
        %s487 = sand.u32 %s128, 1
        %s488 = scalar_lea.sflag [#allocation9], %s487
        %s489 = sand.u32 %s128, 1
        %s490 = smul.addr %s489, 8
        %s491 = scalar_lea.vmem [#allocation8], %s490
        // Predicated region
        $region41: #{tpu_custom_call.1} parent=31 // pred_check
          %p492 = pneg %p112
        $region42: #{tpu_custom_call.1} parent=31 // pred_check_branch
          %494 = sbr.rel (%p492) target = $region44
        $region43: #{tpu_custom_call.1} parent=31 // pred_region
          %s496 = ssub.s32 128, 128
          %497 = vsyncadd %s483, %s496
          %s498 = smul.addr %s26, 128
          %s499 = scalar_lea.hbm %s3, %s498
          %s501 = sshll.u32 %s486, 4
          %s502 = int_to_ptr.vmem [resolvable:$true] %s501
          %504 = dma.vmem_to_hbm [thread:$0]  %s502, 128, %s499, %s483
        $region44: #{tpu_custom_call.1} parent=31 // pred_fallthru
          _
        // Predicated region
        $region45: #{tpu_custom_call.1} parent=31 // pred_check
          %p505 = pneg %p138
        $region46: #{tpu_custom_call.1} parent=31 // pred_check_branch
          %507 = sbr.rel (%p505) target = $region48
        $region47: #{tpu_custom_call.1} parent=31 // pred_region
          %s509 = ssub.s32 128, 128
          %510 = vsyncadd %s488, %s509
          %s511 = smul.addr %s26, 128
          %s512 = scalar_lea.hbm %s4, %s511
          %s514 = sshll.u32 %s491, 4
          %s515 = int_to_ptr.vmem [resolvable:$true] %s514
          %517 = dma.vmem_to_hbm [thread:$0]  %s515, 128, %s512, %s488
        $region48: #{tpu_custom_call.1} parent=31 // pred_fallthru
          _
      $region32: #{tpu_custom_call.1} parent=5 // pred_fallthru
        _
      %p518 = scmp.le.s32.totalorder 2, %s21
      // Predicated region
      $region49: #{tpu_custom_call.1} parent=5 // pred_check
        %p519 = pneg %p518
      $region50: #{tpu_custom_call.1} parent=5 // pred_check_branch
        %521 = sbr.rel (%p519) target = $region52
      $region51: #{tpu_custom_call.1} parent=5 // pred_region
        %s522 = ssub.s32 %s21, 2
        // Predicated region
        $region53: #{tpu_custom_call.1} parent=51 // pred_check
          %p523 = pneg %p118
        $region54: #{tpu_custom_call.1} parent=51 // pred_check_branch
          %525 = sbr.rel (%p523) target = $region56
        $region55: #{tpu_custom_call.1} parent=51 // pred_region
          %s526 = sand.u32 %s103, 1
          %s527 = scalar_lea.sflag [#allocation4], %s526
          %s528 = sand.u32 %s103, 1
          %s529 = smul.addr %s528, 8
          %s530 = scalar_lea.vmem [#allocation7], %s529
          %531 = dma.done %s527, 128
        $region56: #{tpu_custom_call.1} parent=51 // pred_fallthru
          _
        // Predicated region
        $region57: #{tpu_custom_call.1} parent=51 // pred_check
          %p532 = pneg %p144
        $region58: #{tpu_custom_call.1} parent=51 // pred_check_branch
          %534 = sbr.rel (%p532) target = $region60
        $region59: #{tpu_custom_call.1} parent=51 // pred_region
          %s535 = sand.u32 %s129, 1
          %s536 = scalar_lea.sflag [#allocation9], %s535
          %s537 = sand.u32 %s129, 1
          %s538 = smul.addr %s537, 8
          %s539 = scalar_lea.vmem [#allocation8], %s538
          %540 = dma.done %s536, 128
        $region60: #{tpu_custom_call.1} parent=51 // pred_fallthru
          _
      $region52: #{tpu_custom_call.1} parent=5 // pred_fallthru
        _
    $region6: #{tpu_custom_call.1} parent=1 // loop_footer
      %s25 = sadd.s32 1, %s21
    $region7: #{tpu_custom_call.1} parent=1 // loop_footer_branch
      %20 = sbr.rel target = $region3
    $region8: #{tpu_custom_call.1} parent=1 // loop_exit
      _
    %541 = vsyncpa [#allocation3], 1
    %s542 = scalar_lea.sflag [#allocation3], 1
    %543 = vsyncpa %s542, 1
    %544 = vsyncpa [#allocation6], 1
    %545 = vsyncpa [#allocation4], 1
    %s546 = scalar_lea.sflag [#allocation4], 1
    %547 = vsyncpa %s546, 1
    %548 = vsyncpa [#allocation9], 1
    %s549 = scalar_lea.sflag [#allocation9], 1
    %550 = vsyncpa %s549, 1

</llo_original>
